<compile_context>
chip_gen: v7x
topology: tpu7x:2x2x1
jax: 0.10.0
libtpu: 0.0.40
codegen_flags: <defaults>
</compile_context>

<pallas_src>
import jax
import jax.numpy as jnp
import numpy as np
from jax.experimental import pallas as pl
from jax.experimental.pallas import tpu as pltpu


def spectrum_loss_kernel(spec_ref, ang_ref, grid_ref, out_ref):
    spec = spec_ref[...].astype(jnp.float32)   # (TB, A)
    ang = ang_ref[...].astype(jnp.float32)     # (TB, M)
    grid = grid_ref[...].astype(jnp.float32)   # (1, A)

    TB, A = spec.shape
    M = ang.shape[1]

    # Lane-index iota, hoisted out of the per-source loop.
    lane = jax.lax.broadcasted_iota(jnp.int32, (TB, A), 1)

    # counts[b, k] = #{ m : argmin_k' |grid[k'] - ang[b, m]| == k }
    counts = jnp.zeros((TB, A), jnp.float32)
    for m in range(M):  # M is tiny and static; everything stays dense (TB, A)
        a_m = ang[:, m:m + 1]                                  # (TB, 1)
        dist = jnp.abs(grid - a_m)                             # (TB, A)
        min_d = jnp.min(dist, axis=-1, keepdims=True)          # (TB, 1)
        # First-occurrence argmin (torch.argmin tie-break).
        cand = jnp.where(dist == min_d, lane, jnp.int32(A))
        idx = jnp.min(cand, axis=-1, keepdims=True)            # (TB, 1)
        counts = counts + (lane == idx).astype(jnp.float32)

    # Single multiply + reduce against spectrum (not one per source).
    partial = jnp.sum(counts * spec)

    # Lane-aligned (1, 8, 128) partial-sum block; value lives at [0, 0, 0],
    # the remaining lanes are zero so the wrapper can jnp.sum the whole output.
    row = jax.lax.broadcasted_iota(jnp.int32, (1, 8, 128), 1)
    col = jax.lax.broadcasted_iota(jnp.int32, (1, 8, 128), 2)
    out_ref[...] = jnp.where((row == 0) & (col == 0), partial, 0.0)


def spectrum_loss(spectrum, true_angles, angles_grid, *, block_b=256):
    """spectrum (B, A), true_angles (B, M), angles_grid (A,) -> scalar f32."""
    B, A = spectrum.shape
    M = true_angles.shape[1]

    if B <= block_b:
        TB = B            # single tile: block shape == full array shape is legal
        B_pad = B
    else:
        TB = block_b      # multiple of 8 -> sublane-aligned batch tiles
        B_pad = ((B + TB - 1) // TB) * TB

    if B_pad != B:
        pad = B_pad - B
        # Padded rows have zero spectrum -> zero contribution regardless of angle.
        spectrum = jnp.pad(spectrum, ((0, pad), (0, 0)))
        true_angles = jnp.pad(true_angles, ((0, pad), (0, 0)))

    num_tiles = B_pad // TB
    grid2d = angles_grid.reshape(1, A)

    partials = pl.pallas_call(
        spectrum_loss_kernel,
        out_shape=jax.ShapeDtypeStruct((num_tiles, 8, 128), jnp.float32),
        grid_spec=pltpu.PrefetchScalarGridSpec(
            num_scalar_prefetch=0,
            grid=(num_tiles,),
            in_specs=[
                pl.BlockSpec((TB, A), lambda i: (i, 0)),   # spectrum tile
                pl.BlockSpec((TB, M), lambda i: (i, 0)),   # true-angle tile
                pl.BlockSpec((1, A), lambda i: (0, 0)),    # shared angle grid
            ],
            out_specs=pl.BlockSpec((1, 8, 128), lambda i: (i, 0, 0)),
        ),
        compiler_params=pltpu.CompilerParams(
            dimension_semantics=("parallel",),
        ),
    )(spectrum, true_angles, grid2d)

    return -jnp.sum(partials) / B


def _reference(spectrum, true_angles, angles_grid):
    """Pure-numpy replica of the PyTorch forward for verification."""
    spectrum = np.asarray(spectrum)
    true_angles = np.asarray(true_angles)
    angles_grid = np.asarray(angles_grid)
    B = spectrum.shape[0]
    total = 0.0
    for b in range(B):
        for a in true_angles[b]:
            idx = int(np.argmin(np.abs(angles_grid - a)))
            total -= spectrum[b, idx]
    return total / B


if __name__ == "__main__":
    key = jax.random.PRNGKey(0)
    k1, k2, k3, k4 = jax.random.split(key, 4)

    # Small case consistent with the module: batch=2, M=3 sources, 181-pt grid.
    B, M, A = 2, 3, 181
    spectrum = jax.random.uniform(k1, (B, A), dtype=jnp.float32)
    angles_grid = jnp.linspace(-90.0, 90.0, A, dtype=jnp.float32)
    true_angles = jax.random.uniform(k2, (B, M), minval=-90.0, maxval=90.0,
                                     dtype=jnp.float32)

    loss = jax.block_until_ready(spectrum_loss(spectrum, true_angles, angles_grid))
    ref = _reference(spectrum, true_angles, angles_grid)
    assert np.isclose(float(loss), float(ref), rtol=1e-5, atol=1e-5), (float(loss), ref)

    # Larger case exercising the batch-tiled / padded multi-tile path.
    B2 = 300
    spectrum2 = jax.random.uniform(k3, (B2, A), dtype=jnp.float32)
    true_angles2 = jax.random.uniform(k4, (B2, M), minval=-90.0, maxval=90.0,
                                      dtype=jnp.float32)
    loss2 = jax.block_until_ready(spectrum_loss(spectrum2, true_angles2, angles_grid))
    ref2 = _reference(spectrum2, true_angles2, angles_grid)
    assert np.isclose(float(loss2), float(ref2), rtol=1e-5, atol=1e-5), (float(loss2), ref2)

    print("KERNEL_OK")
</pallas_src>

<mosaic_0001>
module attributes {stable_mosaic.version = 11 : i64} {
  func.func @spectrum_loss_kernel(%arg0: i32, %arg1: memref<2x181xf32, #tpu.memory_space<vmem>>, %arg2: memref<2x3xf32, #tpu.memory_space<vmem>>, %arg3: memref<1x181xf32, #tpu.memory_space<vmem>>, %arg4: memref<1x8x128xf32, #tpu.memory_space<vmem>>) attributes {dimension_semantics = [#tpu.dimension_semantics<parallel>], iteration_bounds = array<i64: 1>, scalar_prefetch = 0 : i64, scratch_operands = 0 : i64, tpu.core_type = #tpu.core_type<tc>, window_params = [{transform_indices = @transform_0, window_bounds = array<i64: 2, 181>}, {transform_indices = @transform_1, window_bounds = array<i64: 2, 3>}, {pipeline_mode = #tpu.pipeline_mode<synchronous>, transform_indices = @transform_2, window_bounds = array<i64: 1, 181>}, {transform_indices = @transform_3, window_bounds = array<i64: 1, 8, 128>}]} {
    %c0 = arith.constant 0 : index
    %c0_0 = arith.constant 0 : index
    %0 = vector.load %arg1[%c0, %c0_0] : memref<2x181xf32, #tpu.memory_space<vmem>>, vector<2x181xf32>
    %c0_1 = arith.constant 0 : index
    %c0_2 = arith.constant 0 : index
    %1 = vector.load %arg2[%c0_1, %c0_2] : memref<2x3xf32, #tpu.memory_space<vmem>>, vector<2x3xf32>
    %c0_3 = arith.constant 0 : index
    %c0_4 = arith.constant 0 : index
    %2 = vector.load %arg3[%c0_3, %c0_4] : memref<1x181xf32, #tpu.memory_space<vmem>>, vector<1x181xf32>
    %3 = tpu.iota {dimensions = array<i32: 1>} : vector<2x181xi32>
    %cst = arith.constant 0.000000e+00 : f32
    %4 = vector.broadcast %cst : f32 to vector<2x181xf32>
    %5 = vector.extract_strided_slice %1 {offsets = [0, 0], sizes = [2, 1], strides = [1, 1]} : vector<2x3xf32> to vector<2x1xf32>
    %6 = vector.broadcast %2 : vector<1x181xf32> to vector<2x181xf32>
    %7 = vector.broadcast %5 : vector<2x1xf32> to vector<2x181xf32>
    %8 = arith.subf %6, %7 : vector<2x181xf32>
    %9 = math.absf %8 : vector<2x181xf32>
    %cst_5 = arith.constant dense<0x7F800000> : vector<2xf32>
    %10 = vector.multi_reduction <minimumf>, %9, %cst_5 [1] : vector<2x181xf32> to vector<2xf32>
    %11 = vector.shape_cast %10 : vector<2xf32> to vector<2x1xf32>
    %12 = vector.broadcast %11 : vector<2x1xf32> to vector<2x181xf32>
    %13 = arith.cmpf oeq, %9, %12 : vector<2x181xf32>
    %c181_i32 = arith.constant 181 : i32
    %14 = vector.broadcast %c181_i32 : i32 to vector<2x181xi32>
    %15 = arith.select %13, %3, %14 : vector<2x181xi1>, vector<2x181xi32>
    %cst_6 = arith.constant dense<2147483647> : vector<2xi32>
    %16 = vector.multi_reduction <minsi>, %15, %cst_6 [1] : vector<2x181xi32> to vector<2xi32>
    %17 = vector.shape_cast %16 : vector<2xi32> to vector<2x1xi32>
    %18 = vector.broadcast %17 : vector<2x1xi32> to vector<2x181xi32>
    %19 = arith.cmpi eq, %3, %18 : vector<2x181xi32>
    %20 = arith.extui %19 : vector<2x181xi1> to vector<2x181xi32>
    %21 = arith.sitofp %20 : vector<2x181xi32> to vector<2x181xf32>
    %22 = arith.addf %4, %21 : vector<2x181xf32>
    %23 = vector.extract_strided_slice %1 {offsets = [0, 1], sizes = [2, 1], strides = [1, 1]} : vector<2x3xf32> to vector<2x1xf32>
    %24 = vector.broadcast %2 : vector<1x181xf32> to vector<2x181xf32>
    %25 = vector.broadcast %23 : vector<2x1xf32> to vector<2x181xf32>
    %26 = arith.subf %24, %25 : vector<2x181xf32>
    %27 = math.absf %26 : vector<2x181xf32>
    %cst_7 = arith.constant dense<0x7F800000> : vector<2xf32>
    %28 = vector.multi_reduction <minimumf>, %27, %cst_7 [1] : vector<2x181xf32> to vector<2xf32>
    %29 = vector.shape_cast %28 : vector<2xf32> to vector<2x1xf32>
    %30 = vector.broadcast %29 : vector<2x1xf32> to vector<2x181xf32>
    %31 = arith.cmpf oeq, %27, %30 : vector<2x181xf32>
    %c181_i32_8 = arith.constant 181 : i32
    %32 = vector.broadcast %c181_i32_8 : i32 to vector<2x181xi32>
    %33 = arith.select %31, %3, %32 : vector<2x181xi1>, vector<2x181xi32>
    %cst_9 = arith.constant dense<2147483647> : vector<2xi32>
    %34 = vector.multi_reduction <minsi>, %33, %cst_9 [1] : vector<2x181xi32> to vector<2xi32>
    %35 = vector.shape_cast %34 : vector<2xi32> to vector<2x1xi32>
    %36 = vector.broadcast %35 : vector<2x1xi32> to vector<2x181xi32>
    %37 = arith.cmpi eq, %3, %36 : vector<2x181xi32>
    %38 = arith.extui %37 : vector<2x181xi1> to vector<2x181xi32>
    %39 = arith.sitofp %38 : vector<2x181xi32> to vector<2x181xf32>
    %40 = arith.addf %22, %39 : vector<2x181xf32>
    %41 = vector.extract_strided_slice %1 {offsets = [0, 2], sizes = [2, 1], strides = [1, 1]} : vector<2x3xf32> to vector<2x1xf32>
    %42 = vector.broadcast %2 : vector<1x181xf32> to vector<2x181xf32>
    %43 = vector.broadcast %41 : vector<2x1xf32> to vector<2x181xf32>
    %44 = arith.subf %42, %43 : vector<2x181xf32>
    %45 = math.absf %44 : vector<2x181xf32>
    %cst_10 = arith.constant dense<0x7F800000> : vector<2xf32>
    %46 = vector.multi_reduction <minimumf>, %45, %cst_10 [1] : vector<2x181xf32> to vector<2xf32>
    %47 = vector.shape_cast %46 : vector<2xf32> to vector<2x1xf32>
    %48 = vector.broadcast %47 : vector<2x1xf32> to vector<2x181xf32>
    %49 = arith.cmpf oeq, %45, %48 : vector<2x181xf32>
    %c181_i32_11 = arith.constant 181 : i32
    %50 = vector.broadcast %c181_i32_11 : i32 to vector<2x181xi32>
    %51 = arith.select %49, %3, %50 : vector<2x181xi1>, vector<2x181xi32>
    %cst_12 = arith.constant dense<2147483647> : vector<2xi32>
    %52 = vector.multi_reduction <minsi>, %51, %cst_12 [1] : vector<2x181xi32> to vector<2xi32>
    %53 = vector.shape_cast %52 : vector<2xi32> to vector<2x1xi32>
    %54 = vector.broadcast %53 : vector<2x1xi32> to vector<2x181xi32>
    %55 = arith.cmpi eq, %3, %54 : vector<2x181xi32>
    %56 = arith.extui %55 : vector<2x181xi1> to vector<2x181xi32>
    %57 = arith.sitofp %56 : vector<2x181xi32> to vector<2x181xf32>
    %58 = arith.addf %40, %57 : vector<2x181xf32>
    %59 = arith.mulf %58, %0 : vector<2x181xf32>
    %60 = vector.shape_cast %59 : vector<2x181xf32> to vector<1x2x181xf32>
    %cst_13 = arith.constant dense<0.000000e+00> : vector<1xf32>
    %61 = vector.multi_reduction <add>, %60, %cst_13 [1, 2] : vector<1x2x181xf32> to vector<1xf32>
    %62 = vector.shape_cast %61 : vector<1xf32> to vector<1x1x1xf32>
    %63 = vector.extract %62[0, 0, 0] : f32 from vector<1x1x1xf32>
    %64 = tpu.iota {dimensions = array<i32: 1>} : vector<1x8x128xi32>
    %65 = tpu.iota {dimensions = array<i32: 2>} : vector<1x8x128xi32>
    %c0_i32 = arith.constant 0 : i32
    %66 = vector.broadcast %c0_i32 : i32 to vector<1x8x128xi32>
    %67 = arith.cmpi eq, %64, %66 : vector<1x8x128xi32>
    %c0_i32_14 = arith.constant 0 : i32
    %68 = vector.broadcast %c0_i32_14 : i32 to vector<1x8x128xi32>
    %69 = arith.cmpi eq, %65, %68 : vector<1x8x128xi32>
    %70 = arith.andi %67, %69 : vector<1x8x128xi1>
    %cst_15 = arith.constant 0.000000e+00 : f32
    %71 = vector.broadcast %63 : f32 to vector<1x8x128xf32>
    %72 = vector.broadcast %cst_15 : f32 to vector<1x8x128xf32>
    %73 = arith.select %70, %71, %72 : vector<1x8x128xi1>, vector<1x8x128xf32>
    %c0_16 = arith.constant 0 : index
    %c0_17 = arith.constant 0 : index
    %c0_18 = arith.constant 0 : index
    %74 = vector.load %arg4[%c0_16, %c0_17, %c0_18] : memref<1x8x128xf32, #tpu.memory_space<vmem>>, vector<1x8x128xf32>
    tpu.vector_store %arg4[%c0_16, %c0_17, %c0_18], %73 {strides = array<i32>} : memref<1x8x128xf32, #tpu.memory_space<vmem>>, vector<1x8x128xf32>,
    return
  }
  func.func @transform_0(%arg0: i32) -> (i32, i32) {
    %c0_i32 = arith.constant 0 : i32
    %c0_i32_0 = arith.constant 0 : i32
    return %arg0, %c0_i32 : i32, i32
  }
  func.func @transform_1(%arg0: i32) -> (i32, i32) {
    %c0_i32 = arith.constant 0 : i32
    %c0_i32_0 = arith.constant 0 : i32
    return %arg0, %c0_i32 : i32, i32
  }
  func.func @transform_2(%arg0: i32) -> (i32, i32) {
    %c0_i32 = arith.constant 0 : i32
    %c0_i32_0 = arith.constant 0 : i32
    %c0_i32_1 = arith.constant 0 : i32
    return %c0_i32, %c0_i32_0 : i32, i32
  }
  func.func @transform_3(%arg0: i32) -> (i32, i32, i32) {
    %c0_i32 = arith.constant 0 : i32
    %c0_i32_0 = arith.constant 0 : i32
    %c0_i32_1 = arith.constant 0 : i32
    return %arg0, %c0_i32, %c0_i32_0 : i32, i32, i32
  }
}

</mosaic_0001>

<llo_original>
// kernel: tpu_custom_call.1
$region0: #{tpu_custom_call.1}
  #allocation0 [shape = 'u32[]', space=smem, size = 0x4, offset = 0x4, fixed_abs, tag = 'smem constant byte address 0x4 - core index']
  #allocation1 [shape = 'u32[144,128]{1,0:T(1,128)}', space=vmem, size = 0x12000, scoped, tag = 'internal scratch']
  %s0 = inlined_call_operand.hbm [shape: f32[2,181], index: 0, kind: input, shape index: {}]
  %s1 = inlined_call_operand.vmem [shape: f32[2,3], index: 1, kind: input, shape index: {}]
  %s2 = inlined_call_operand.vmem [shape: f32[1,181], index: 2, kind: input, shape index: {}]
  %s3 = inlined_call_operand.hbm [shape: f32[1,8,128], index: 3, kind: output, shape index: {}]
  %s4 = sld [smem:[#allocation0]]
  $region26: #{tpu_custom_call.1} parent=0
    _
  %s6 = ssub.s32 1, %s4
  %s7 = scalar_select 0, %s6, %s4
  $region1: #{tpu_custom_call.1} parent=0
    #allocation2 [shape = 'u8[2048]{0}', space=vmem, size = 0x800, scoped, tag = 'input window, operand 0, single buffered']
    #allocation3 [shape = 's32[1]{0}', space=sflag, size = 0x4, scoped, tag = 'scoped memory for tpu_custom_call.1']
    #allocation4 [shape = 's32[1]{0}', space=sflag, size = 0x4, scoped, tag = 'scoped memory for tpu_custom_call.1']
    #allocation5 [shape = 'u8[4096]{0}', space=vmem, size = 0x1000, scoped, tag = 'output window, operand 0, single buffered']
    %8 = vsyncpa [#allocation3], 0
    %9 = vsyncpa [#allocation4], 0
    // Predicated region
    $region2: #{tpu_custom_call.1} parent=1 // pred_check
      _
    $region3: #{tpu_custom_call.1} parent=1 // pred_check_branch
      %11 = sbr.rel (0) target = $region5
    $region4: #{tpu_custom_call.1} parent=1 // pred_region
      %s13 = ssub.s32 64, 64
      %14 = vsyncadd [#allocation3], %s13
      %s16 = sshll.u32 [#allocation2], 4
      %s17 = int_to_ptr.vmem [resolvable:$true] %s16
      %19 = dma.hbm_to_vmem [thread:$0]  %s0, 64, %s17, [#allocation3]
    $region5: #{tpu_custom_call.1} parent=1 // pred_fallthru
      _
    // Predicated region
    $region6: #{tpu_custom_call.1} parent=1 // pred_check
      _
    $region7: #{tpu_custom_call.1} parent=1 // pred_check_branch
      %21 = sbr.rel (0) target = $region9
    $region8: #{tpu_custom_call.1} parent=1 // pred_region
      _
    $region9: #{tpu_custom_call.1} parent=1 // pred_fallthru
      _
    // Predicated region
    $region10: #{tpu_custom_call.1} parent=1 // pred_check
      _
    $region11: #{tpu_custom_call.1} parent=1 // pred_check_branch
      %23 = sbr.rel (0) target = $region13
    $region12: #{tpu_custom_call.1} parent=1 // pred_region
      _
    $region13: #{tpu_custom_call.1} parent=1 // pred_fallthru
      _
    // Predicated region
    $region14: #{tpu_custom_call.1} parent=1 // pred_check
      _
    $region15: #{tpu_custom_call.1} parent=1 // pred_check_branch
      %25 = sbr.rel (0) target = $region17
    $region16: #{tpu_custom_call.1} parent=1 // pred_region
      %26 = dma.done [#allocation3], 64
    $region17: #{tpu_custom_call.1} parent=1 // pred_fallthru
      _
    %v27 = vld [vmem:[#allocation2] sm:$0xf]
    %v28 = vld [vmem:[%s1] sm:$0x3]
    %v29 = vld [vmem:[%s2] sm:$0x3]
    %v30 = vlaneseq
    %v31 = vand.u32 %v30, 127
    %v32 = vadd.s32 %v31, 128
    %v34 = vlaneseq
    %v35 = vshrl.u32 %v34, 7
    %v36 = vsub.s32 0, %v35
    %v37 = vrot.slane %v29, %v36
    %v38 = vlaneseq
    %v39 = vshrl.u32 %v38, 7
    %v40 = vsub.s32 1, %v39
    %v41 = vrot.slane %v29, %v40
    %45 = vset.pattern.permute.xlu0 0
    %46 = vperm.xlu0 %45, %v28
    %v47 = vpop.permute.xlu0 %46
    %v49 = vsub.f32 %v37, %v47
    %v50 = vsub.f32 %v41, %v47
    %v51 = vand.u32 2147483647, %v49
    %v52 = vand.u32 2147483647, %v50
    %vm53 = vcmask 1041408
    %v54 = vsel %vm53, %v51, inf
    %vm55 = vcmask 427008
    %v56 = vsel %vm55, %v52, inf
    %v57 = vmin.f32 %v54, %v56
    %58 = vmin.xlane.f32.xlu0 %v57
    %v59 = vpop.xlane.xlu0 %58
    %vm60 = vcmp.eq.f32.partialorder %v51, %v59
    %vm61 = vcmp.eq.f32.partialorder %v52, %v59
    %v62 = vsel %vm60, %v31, 181
    %v63 = vsel %vm61, %v32, 181
    %v64 = vsel %vm53, %v62, 2147483647
    %v65 = vsel %vm55, %v63, 2147483647
    %vm66 = vcmp.lt.s32.totalorder %v64, %v65
    %v67 = vsel %vm66, %v64, %v65
    %v68 = vand.u32 %v67, 65535
    %v69 = vshra.s32 %v67, 16
    %v70 = vcvt.s32.f32 %v68
    %v71 = vcvt.s32.f32 %v69
    %72 = vmin.xlane.f32.xlu0 %v71
    %v73 = vpop.xlane.xlu0 %72
    %vm74 = vcmp.eq.f32.partialorder %v71, %v73
    %v75 = vsel %vm74, %v70, inf
    %76 = vmin.xlane.f32.xlu0 %v75
    %v77 = vpop.xlane.xlu0 %76
    %v78 = vcvt.f32.s32 %v77
    %v79 = vcvt.f32.s32 %v73
    %v80 = vshll.u32 %v79, 16
    %v81 = vadd.s32 %v80, %v78
    %vm82 = vcmp.eq.s32.totalorder %v31, %v81
    %vm83 = vcmp.eq.s32.totalorder %v32, %v81
    %v84 = vsel %vm82, 1, 0
    %v85 = vsel %vm83, 1, 0
    %v86 = vcvt.s32.f32 %v84
    %v87 = vcvt.s32.f32 %v85
    %v88 = vadd.f32 %v86, 0.0
    %v89 = vadd.f32 %v87, 0.0
    %90 = vset.pattern.permute.xlu0 1
    %91 = vperm.xlu0 %90, %v28
    %v92 = vpop.permute.xlu0 %91
    %v94 = vsub.f32 %v37, %v92
    %v95 = vsub.f32 %v41, %v92
    %v96 = vand.u32 2147483647, %v94
    %v97 = vand.u32 2147483647, %v95
    %v98 = vsel %vm53, %v96, inf
    %v99 = vsel %vm55, %v97, inf
    %v100 = vmin.f32 %v98, %v99
    %101 = vmin.xlane.f32.xlu0 %v100
    %v102 = vpop.xlane.xlu0 %101
    %vm103 = vcmp.eq.f32.partialorder %v96, %v102
    %vm104 = vcmp.eq.f32.partialorder %v97, %v102
    %v105 = vsel %vm103, %v31, 181
    %v106 = vsel %vm104, %v32, 181
    %v107 = vsel %vm53, %v105, 2147483647
    %v108 = vsel %vm55, %v106, 2147483647
    %vm109 = vcmp.lt.s32.totalorder %v107, %v108
    %v110 = vsel %vm109, %v107, %v108
    %v111 = vand.u32 %v110, 65535
    %v112 = vshra.s32 %v110, 16
    %v113 = vcvt.s32.f32 %v111
    %v114 = vcvt.s32.f32 %v112
    %115 = vmin.xlane.f32.xlu0 %v114
    %v116 = vpop.xlane.xlu0 %115
    %vm117 = vcmp.eq.f32.partialorder %v114, %v116
    %v118 = vsel %vm117, %v113, inf
    %119 = vmin.xlane.f32.xlu0 %v118
    %v120 = vpop.xlane.xlu0 %119
    %v121 = vcvt.f32.s32 %v120
    %v122 = vcvt.f32.s32 %v116
    %v123 = vshll.u32 %v122, 16
    %v124 = vadd.s32 %v123, %v121
    %vm125 = vcmp.eq.s32.totalorder %v31, %v124
    %vm126 = vcmp.eq.s32.totalorder %v32, %v124
    %v127 = vsel %vm125, 1, 0
    %v128 = vsel %vm126, 1, 0
    %v129 = vcvt.s32.f32 %v127
    %v130 = vcvt.s32.f32 %v128
    %v131 = vadd.f32 %v88, %v129
    %v132 = vadd.f32 %v89, %v130
    %133 = vset.pattern.permute.xlu0 2
    %134 = vperm.xlu0 %133, %v28
    %v135 = vpop.permute.xlu0 %134
    %v137 = vsub.f32 %v37, %v135
    %v138 = vsub.f32 %v41, %v135
    %v139 = vand.u32 2147483647, %v137
    %v140 = vand.u32 2147483647, %v138
    %v141 = vsel %vm53, %v139, inf
    %v142 = vsel %vm55, %v140, inf
    %v143 = vmin.f32 %v141, %v142
    %144 = vmin.xlane.f32.xlu0 %v143
    %v145 = vpop.xlane.xlu0 %144
    %vm146 = vcmp.eq.f32.partialorder %v139, %v145
    %vm147 = vcmp.eq.f32.partialorder %v140, %v145
    %v148 = vsel %vm146, %v31, 181
    %v149 = vsel %vm147, %v32, 181
    %v150 = vsel %vm53, %v148, 2147483647
    %v151 = vsel %vm55, %v149, 2147483647
    %vm152 = vcmp.lt.s32.totalorder %v150, %v151
    %v153 = vsel %vm152, %v150, %v151
    %v154 = vand.u32 %v153, 65535
    %v155 = vshra.s32 %v153, 16
    %v156 = vcvt.s32.f32 %v154
    %v157 = vcvt.s32.f32 %v155
    %158 = vmin.xlane.f32.xlu0 %v157
    %v159 = vpop.xlane.xlu0 %158
    %vm160 = vcmp.eq.f32.partialorder %v157, %v159
    %v161 = vsel %vm160, %v156, inf
    %162 = vmin.xlane.f32.xlu0 %v161
    %v163 = vpop.xlane.xlu0 %162
    %v164 = vcvt.f32.s32 %v163
    %v165 = vcvt.f32.s32 %v159
    %v166 = vshll.u32 %v165, 16
    %v167 = vadd.s32 %v166, %v164
    %vm168 = vcmp.eq.s32.totalorder %v31, %v167
    %vm169 = vcmp.eq.s32.totalorder %v32, %v167
    %v170 = vsel %vm168, 1, 0
    %v171 = vsel %vm169, 1, 0
    %v172 = vcvt.s32.f32 %v170
    %v173 = vcvt.s32.f32 %v171
    %v174 = vadd.f32 %v131, %v172
    %v175 = vadd.f32 %v132, %v173
    %v178 = vunpack.c.l.s4 1983009808
    %v179 = vunpack.c.0.s8 %v178
    %v180 = vlaneseq
    %v181 = vshrl.u32 %v180, 7
    %v182 = vsub.s32 %v179, %v181
    %v183 = vrot.slane %v27, %v182
    %v184 = vcombine.high %v183, %v183
    %v187 = vmul.f32 %v174, %v183
    %v188 = vmul.f32 %v175, %v184
    %v189 = vsel %vm53, %v187, 0.0
    %v190 = vsel %vm55, %v188, 0.0
    %v191 = vadd.f32 %v189, %v190
    %192 = vadd.xlane.f32.xlu0 %v191
    %v193 = vpop.xlane.xlu0 %192
    %v194 = vrot.slane %v193, 4
    %v195 = vadd.f32 %v193, %v194
    %v196 = vrot.slane %v195, 2
    %v197 = vadd.f32 %v195, %v196
    %v198 = vrot.slane %v197, 1
    %v199 = vadd.f32 %v197, %v198
    %s200 = vtos %v199
    %v201 = vlaneseq
    %v202 = vshrl.u32 %v201, 7
    %vm203 = vcmp.eq.s32.totalorder %v202, 0
    %vm204 = vcmp.eq.s32.totalorder %v31, 0
    %vm205 = vmand %vm203, %vm204
    %v206 = vstv %s200
    %v207 = vsel %vm205, %v206, 0.0
    %208 = vst [vmem:[#allocation5] sm:$0xff] %v207
    // Predicated region
    $region18: #{tpu_custom_call.1} parent=1 // pred_check
      _
    $region19: #{tpu_custom_call.1} parent=1 // pred_check_branch
      %210 = sbr.rel (0) target = $region21
    $region20: #{tpu_custom_call.1} parent=1 // pred_region
      %s212 = ssub.s32 128, 128
      %213 = vsyncadd [#allocation4], %s212
      %s215 = sshll.u32 [#allocation5], 4
      %s216 = int_to_ptr.vmem [resolvable:$true] %s215
      %218 = dma.vmem_to_hbm [thread:$0]  %s216, 128, %s3, [#allocation4]
    $region21: #{tpu_custom_call.1} parent=1 // pred_fallthru
      _
    // Predicated region
    $region22: #{tpu_custom_call.1} parent=1 // pred_check
      _
    $region23: #{tpu_custom_call.1} parent=1 // pred_check_branch
      %220 = sbr.rel (0) target = $region25
    $region24: #{tpu_custom_call.1} parent=1 // pred_region
      %221 = dma.done [#allocation4], 128
    $region25: #{tpu_custom_call.1} parent=1 // pred_fallthru
      _
    %222 = vsyncpa [#allocation3], 1
    %223 = vsyncpa [#allocation4], 1

</llo_original>
